<compile_context>
chip_gen: v7x
topology: tpu7x:2x2x1
jax: 0.10.0
libtpu: 0.0.40
codegen_flags: <defaults>
</compile_context>

<pallas_src>
import math

import jax
import jax.numpy as jnp
from jax.experimental import pallas as pl
from jax.experimental.pallas import tpu as pltpu

_VMEM_WORKSET_BUDGET = 32 * 1024 * 1024   # target double-buffered working set
_VMEM_LIMIT_BYTES = 48 * 1024 * 1024      # scoped VMEM request (headroom on 64 MiB v7x)


def _linear_group_kernel(x_ref, w_ref, b_ref, o_ref):
    """x_ref: (TM, GT, H)  w_ref: (GT, H, K)  b_ref: (GT, 1, K)  o_ref: (TM, GT, K)."""
    gt = w_ref.shape[0]
    # Static (unrolled) loop over the groups held in this tile: each iteration is
    # an independent (TM, H) x (H, K) matmul on the MXU with f32 accumulation.
    for g in range(gt):
        xg = x_ref[:, g, :]                                          # (TM, H)
        wg = w_ref[g]                                                # (H, K)
        acc = jnp.dot(xg, wg, preferred_element_type=jnp.float32)    # (TM, K)
        acc = acc + b_ref[g].astype(jnp.float32)                     # (1, K) broadcast
        o_ref[:, g, :] = acc.astype(o_ref.dtype)


def _choose_tiles(B, G, H, K, itemsize, budget=_VMEM_WORKSET_BUDGET):
    """Pick (TM, GT) so the double-buffered per-step working set fits `budget`."""

    def footprint(tm, gt):
        # x block + weight block + bias block + out block, x2 for double buffering.
        return 2 * itemsize * (tm * gt * H + gt * H * K + gt * K + tm * gt * K)

    # Group tile: prefer all groups per step; otherwise a multiple-of-8 divisor
    # of G (keeps the block's second-to-last dim sublane aligned).
    gt = G
    if footprint(8, G) > budget:
        for cand in range(8 * (G // 8), 0, -8):
            if G % cand == 0 and footprint(8, cand) <= budget:
                gt = cand
                break

    # Batch tile: the whole batch if small enough, otherwise the largest
    # lane/sublane-friendly size that fits the budget.
    if B <= 1024 and footprint(B, gt) <= budget:
        tm = max(B, 1)
    else:
        tm = 8
        for cand in (1024, 512, 256, 128, 64, 32, 16, 8):
            if footprint(cand, gt) <= budget:
                tm = cand
                break
    return tm, gt


def linear_group(x, weight, bias=None):
    """Grouped linear: x [..., G, H], weight [G, K, H], bias [G, K] -> [..., G, K]."""
    G, K, H = weight.shape
    assert x.shape[-2:] == (G, H), (x.shape, weight.shape)
    lead = x.shape[:-2]
    B = int(math.prod(lead)) if lead else 1

    x2 = x.reshape(B, G, H)                       # free reshape: no transpose
    w_hk = jnp.swapaxes(weight, 1, 2)             # (G, H, K): tiny one-off transpose
    if bias is None:
        bias = jnp.zeros((G, K), dtype=x.dtype)
    b3 = bias.reshape(G, 1, K)

    tm, gt = _choose_tiles(B, G, H, K, jnp.dtype(x.dtype).itemsize)
    nb = pl.cdiv(B, tm)
    ng = G // gt
    b_pad = nb * tm
    if b_pad != B:
        x2 = jnp.pad(x2, ((0, b_pad - B), (0, 0), (0, 0)))

    out = pl.pallas_call(
        _linear_group_kernel,
        out_shape=jax.ShapeDtypeStruct((b_pad, G, K), x.dtype),
        grid_spec=pltpu.PrefetchScalarGridSpec(
            num_scalar_prefetch=0,
            grid=(ng, nb),                        # batch axis innermost: the weight
            in_specs=[                            # tile is reused across it
                pl.BlockSpec((tm, gt, H), lambda g, b: (b, g, 0)),
                pl.BlockSpec((gt, H, K), lambda g, b: (g, 0, 0)),
                pl.BlockSpec((gt, 1, K), lambda g, b: (g, 0, 0)),
            ],
            out_specs=pl.BlockSpec((tm, gt, K), lambda g, b: (b, g, 0)),
        ),
        compiler_params=pltpu.CompilerParams(
            dimension_semantics=("parallel", "parallel"),
            vmem_limit_bytes=_VMEM_LIMIT_BYTES,
        ),
    )(x2, w_hk, b3)

    if b_pad != B:
        out = out[:B]
    return out.reshape(*lead, G, K)


def init_params(key, in_features, out_features, num_groups, dtype=jnp.float32):
    """Deterministic init mimicking PyTorch kaiming_uniform_(a=sqrt(5)) + bias bound."""
    wkey, bkey = jax.random.split(key)
    # PyTorch fan_in for a 3-D weight (G, K, H): K * H.
    fan_in = out_features * in_features
    bound = 1.0 / math.sqrt(fan_in)
    weight = jax.random.uniform(
        wkey, (num_groups, out_features, in_features),
        minval=-bound, maxval=bound, dtype=dtype)
    bias = jax.random.uniform(
        bkey, (num_groups, out_features),
        minval=-bound, maxval=bound, dtype=dtype)
    return weight, bias


if __name__ == "__main__":
    key = jax.random.PRNGKey(0)
    kx, kp = jax.random.split(key)

    batch, seq = 2, 8
    num_groups, in_features, out_features = 4, 32, 32

    x = jax.random.normal(kx, (batch, seq, num_groups, in_features),
                          dtype=jnp.float32)
    weight, bias = init_params(kp, in_features, out_features, num_groups)

    out = linear_group(x, weight, bias)
    out = jax.block_until_ready(out)

    # Reference check (plain JAX einsum, same semantics as torch.einsum).
    ref = jnp.einsum('...gh,gkh->...gk', x, weight) + bias
    assert out.shape == (batch, seq, num_groups, out_features)
    assert jnp.allclose(out, ref, atol=1e-5, rtol=1e-5)

    print("KERNEL_OK")
</pallas_src>

<mosaic_0001>
module attributes {stable_mosaic.version = 11 : i64} {
  func.func @_linear_group_kernel(%arg0: i32, %arg1: i32, %arg2: memref<16x4x32xf32, #tpu.memory_space<vmem>>, %arg3: memref<4x32x32xf32, #tpu.memory_space<vmem>>, %arg4: memref<4x1x32xf32, #tpu.memory_space<vmem>>, %arg5: memref<16x4x32xf32, #tpu.memory_space<vmem>>) attributes {dimension_semantics = [#tpu.dimension_semantics<parallel>, #tpu.dimension_semantics<parallel>], iteration_bounds = array<i64: 1, 1>, scalar_prefetch = 0 : i64, scratch_operands = 0 : i64, tpu.core_type = #tpu.core_type<tc>, window_params = [{transform_indices = @transform_0, window_bounds = array<i64: 16, 4, 32>}, {transform_indices = @transform_1, window_bounds = array<i64: 4, 32, 32>}, {transform_indices = @transform_2, window_bounds = array<i64: 4, 1, 32>}, {transform_indices = @transform_3, window_bounds = array<i64: 16, 4, 32>}]} {
    %c0 = arith.constant 0 : index
    %c0_0 = arith.constant 0 : index
    %c0_1 = arith.constant 0 : index
    %0 = vector.load %arg2[%c0, %c0_0, %c0_1] : memref<16x4x32xf32, #tpu.memory_space<vmem>>, vector<16x1x32xf32>
    %1 = vector.shape_cast %0 : vector<16x1x32xf32> to vector<16x32xf32>
    %c0_2 = arith.constant 0 : index
    %c0_3 = arith.constant 0 : index
    %c0_4 = arith.constant 0 : index
    %2 = vector.load %arg3[%c0_2, %c0_3, %c0_4] : memref<4x32x32xf32, #tpu.memory_space<vmem>>, vector<1x32x32xf32>
    %3 = vector.shape_cast %2 : vector<1x32x32xf32> to vector<32x32xf32>
    %cst = arith.constant dense<0.000000e+00> : vector<16x32xf32>
    %4 = tpu.matmul %1, %3, %cst {dimension_numbers = #tpu.dot_dimension_numbers<[1], [0], [0], [1], [0, 0, 1, 1], [], []>} : vector<16x32xf32>, vector<32x32xf32>, vector<16x32xf32> -> vector<16x32xf32>
    %c0_5 = arith.constant 0 : index
    %c0_6 = arith.constant 0 : index
    %c0_7 = arith.constant 0 : index
    %5 = vector.load %arg4[%c0_5, %c0_6, %c0_7] : memref<4x1x32xf32, #tpu.memory_space<vmem>>, vector<1x1x32xf32>
    %6 = vector.shape_cast %5 : vector<1x1x32xf32> to vector<1x32xf32>
    %7 = vector.broadcast %6 : vector<1x32xf32> to vector<16x32xf32>
    %8 = arith.addf %4, %7 : vector<16x32xf32>
    %c0_8 = arith.constant 0 : index
    %c0_9 = arith.constant 0 : index
    %c0_10 = arith.constant 0 : index
    %9 = vector.load %arg5[%c0_8, %c0_9, %c0_10] : memref<16x4x32xf32, #tpu.memory_space<vmem>>, vector<16x1x32xf32>
    %10 = vector.shape_cast %9 : vector<16x1x32xf32> to vector<16x32xf32>
    %11 = vector.shape_cast %8 : vector<16x32xf32> to vector<16x1x32xf32>
    tpu.vector_store %arg5[%c0_8, %c0_9, %c0_10], %11 {strides = array<i32>} : memref<16x4x32xf32, #tpu.memory_space<vmem>>, vector<16x1x32xf32>,
    %c0_11 = arith.constant 0 : index
    %c1 = arith.constant 1 : index
    %c0_12 = arith.constant 0 : index
    %12 = vector.load %arg2[%c0_11, %c1, %c0_12] : memref<16x4x32xf32, #tpu.memory_space<vmem>>, vector<16x1x32xf32>
    %13 = vector.shape_cast %12 : vector<16x1x32xf32> to vector<16x32xf32>
    %c1_13 = arith.constant 1 : index
    %c0_14 = arith.constant 0 : index
    %c0_15 = arith.constant 0 : index
    %14 = vector.load %arg3[%c1_13, %c0_14, %c0_15] : memref<4x32x32xf32, #tpu.memory_space<vmem>>, vector<1x32x32xf32>
    %15 = vector.shape_cast %14 : vector<1x32x32xf32> to vector<32x32xf32>
    %cst_16 = arith.constant dense<0.000000e+00> : vector<16x32xf32>
    %16 = tpu.matmul %13, %15, %cst_16 {dimension_numbers = #tpu.dot_dimension_numbers<[1], [0], [0], [1], [0, 0, 1, 1], [], []>} : vector<16x32xf32>, vector<32x32xf32>, vector<16x32xf32> -> vector<16x32xf32>
    %c1_17 = arith.constant 1 : index
    %c0_18 = arith.constant 0 : index
    %c0_19 = arith.constant 0 : index
    %17 = vector.load %arg4[%c1_17, %c0_18, %c0_19] : memref<4x1x32xf32, #tpu.memory_space<vmem>>, vector<1x1x32xf32>
    %18 = vector.shape_cast %17 : vector<1x1x32xf32> to vector<1x32xf32>
    %19 = vector.broadcast %18 : vector<1x32xf32> to vector<16x32xf32>
    %20 = arith.addf %16, %19 : vector<16x32xf32>
    %c0_20 = arith.constant 0 : index
    %c1_21 = arith.constant 1 : index
    %c0_22 = arith.constant 0 : index
    %21 = vector.load %arg5[%c0_20, %c1_21, %c0_22] : memref<16x4x32xf32, #tpu.memory_space<vmem>>, vector<16x1x32xf32>
    %22 = vector.shape_cast %21 : vector<16x1x32xf32> to vector<16x32xf32>
    %23 = vector.shape_cast %20 : vector<16x32xf32> to vector<16x1x32xf32>
    tpu.vector_store %arg5[%c0_20, %c1_21, %c0_22], %23 {strides = array<i32>} : memref<16x4x32xf32, #tpu.memory_space<vmem>>, vector<16x1x32xf32>,
    %c0_23 = arith.constant 0 : index
    %c2 = arith.constant 2 : index
    %c0_24 = arith.constant 0 : index
    %24 = vector.load %arg2[%c0_23, %c2, %c0_24] : memref<16x4x32xf32, #tpu.memory_space<vmem>>, vector<16x1x32xf32>
    %25 = vector.shape_cast %24 : vector<16x1x32xf32> to vector<16x32xf32>
    %c2_25 = arith.constant 2 : index
    %c0_26 = arith.constant 0 : index
    %c0_27 = arith.constant 0 : index
    %26 = vector.load %arg3[%c2_25, %c0_26, %c0_27] : memref<4x32x32xf32, #tpu.memory_space<vmem>>, vector<1x32x32xf32>
    %27 = vector.shape_cast %26 : vector<1x32x32xf32> to vector<32x32xf32>
    %cst_28 = arith.constant dense<0.000000e+00> : vector<16x32xf32>
    %28 = tpu.matmul %25, %27, %cst_28 {dimension_numbers = #tpu.dot_dimension_numbers<[1], [0], [0], [1], [0, 0, 1, 1], [], []>} : vector<16x32xf32>, vector<32x32xf32>, vector<16x32xf32> -> vector<16x32xf32>
    %c2_29 = arith.constant 2 : index
    %c0_30 = arith.constant 0 : index
    %c0_31 = arith.constant 0 : index
    %29 = vector.load %arg4[%c2_29, %c0_30, %c0_31] : memref<4x1x32xf32, #tpu.memory_space<vmem>>, vector<1x1x32xf32>
    %30 = vector.shape_cast %29 : vector<1x1x32xf32> to vector<1x32xf32>
    %31 = vector.broadcast %30 : vector<1x32xf32> to vector<16x32xf32>
    %32 = arith.addf %28, %31 : vector<16x32xf32>
    %c0_32 = arith.constant 0 : index
    %c2_33 = arith.constant 2 : index
    %c0_34 = arith.constant 0 : index
    %33 = vector.load %arg5[%c0_32, %c2_33, %c0_34] : memref<16x4x32xf32, #tpu.memory_space<vmem>>, vector<16x1x32xf32>
    %34 = vector.shape_cast %33 : vector<16x1x32xf32> to vector<16x32xf32>
    %35 = vector.shape_cast %32 : vector<16x32xf32> to vector<16x1x32xf32>
    tpu.vector_store %arg5[%c0_32, %c2_33, %c0_34], %35 {strides = array<i32>} : memref<16x4x32xf32, #tpu.memory_space<vmem>>, vector<16x1x32xf32>,
    %c0_35 = arith.constant 0 : index
    %c3 = arith.constant 3 : index
    %c0_36 = arith.constant 0 : index
    %36 = vector.load %arg2[%c0_35, %c3, %c0_36] : memref<16x4x32xf32, #tpu.memory_space<vmem>>, vector<16x1x32xf32>
    %37 = vector.shape_cast %36 : vector<16x1x32xf32> to vector<16x32xf32>
    %c3_37 = arith.constant 3 : index
    %c0_38 = arith.constant 0 : index
    %c0_39 = arith.constant 0 : index
    %38 = vector.load %arg3[%c3_37, %c0_38, %c0_39] : memref<4x32x32xf32, #tpu.memory_space<vmem>>, vector<1x32x32xf32>
    %39 = vector.shape_cast %38 : vector<1x32x32xf32> to vector<32x32xf32>
    %cst_40 = arith.constant dense<0.000000e+00> : vector<16x32xf32>
    %40 = tpu.matmul %37, %39, %cst_40 {dimension_numbers = #tpu.dot_dimension_numbers<[1], [0], [0], [1], [0, 0, 1, 1], [], []>} : vector<16x32xf32>, vector<32x32xf32>, vector<16x32xf32> -> vector<16x32xf32>
    %c3_41 = arith.constant 3 : index
    %c0_42 = arith.constant 0 : index
    %c0_43 = arith.constant 0 : index
    %41 = vector.load %arg4[%c3_41, %c0_42, %c0_43] : memref<4x1x32xf32, #tpu.memory_space<vmem>>, vector<1x1x32xf32>
    %42 = vector.shape_cast %41 : vector<1x1x32xf32> to vector<1x32xf32>
    %43 = vector.broadcast %42 : vector<1x32xf32> to vector<16x32xf32>
    %44 = arith.addf %40, %43 : vector<16x32xf32>
    %c0_44 = arith.constant 0 : index
    %c3_45 = arith.constant 3 : index
    %c0_46 = arith.constant 0 : index
    %45 = vector.load %arg5[%c0_44, %c3_45, %c0_46] : memref<16x4x32xf32, #tpu.memory_space<vmem>>, vector<16x1x32xf32>
    %46 = vector.shape_cast %45 : vector<16x1x32xf32> to vector<16x32xf32>
    %47 = vector.shape_cast %44 : vector<16x32xf32> to vector<16x1x32xf32>
    tpu.vector_store %arg5[%c0_44, %c3_45, %c0_46], %47 {strides = array<i32>} : memref<16x4x32xf32, #tpu.memory_space<vmem>>, vector<16x1x32xf32>,
    return
  }
  func.func @transform_0(%arg0: i32, %arg1: i32) -> (i32, i32, i32) {
    %c0_i32 = arith.constant 0 : i32
    %c0_i32_0 = arith.constant 0 : i32
    return %arg1, %arg0, %c0_i32 : i32, i32, i32
  }
  func.func @transform_1(%arg0: i32, %arg1: i32) -> (i32, i32, i32) {
    %c0_i32 = arith.constant 0 : i32
    %c0_i32_0 = arith.constant 0 : i32
    %c0_i32_1 = arith.constant 0 : i32
    return %arg0, %c0_i32, %c0_i32_0 : i32, i32, i32
  }
  func.func @transform_2(%arg0: i32, %arg1: i32) -> (i32, i32, i32) {
    %c0_i32 = arith.constant 0 : i32
    %c0_i32_0 = arith.constant 0 : i32
    %c0_i32_1 = arith.constant 0 : i32
    return %arg0, %c0_i32, %c0_i32_0 : i32, i32, i32
  }
  func.func @transform_3(%arg0: i32, %arg1: i32) -> (i32, i32, i32) {
    %c0_i32 = arith.constant 0 : i32
    %c0_i32_0 = arith.constant 0 : i32
    return %arg1, %arg0, %c0_i32 : i32, i32, i32
  }
}

</mosaic_0001>

<llo_original>
// kernel: tpu_custom_call.1
$region0: #{tpu_custom_call.1}
  #allocation0 [shape = 'u32[]', space=smem, size = 0x4, offset = 0x4, fixed_abs, tag = 'smem constant byte address 0x4 - core index']
  #allocation1 [shape = 'u32[144,128]{1,0:T(1,128)}', space=vmem, size = 0x12000, scoped, tag = 'internal scratch']
  %s0 = inlined_call_operand.hbm [shape: f32[16,4,32], index: 0, kind: input, shape index: {}]
  %s1 = inlined_call_operand.hbm [shape: f32[4,32,32], index: 1, kind: input, shape index: {}]
  %s2 = inlined_call_operand.vmem [shape: f32[4,1,32], index: 2, kind: input, shape index: {}]
  %s3 = inlined_call_operand.hbm [shape: f32[16,4,32], index: 3, kind: output, shape index: {}]
  %s4 = sld [smem:[#allocation0]]
  $region30: #{tpu_custom_call.1} parent=0
    _
  %s6 = ssub.s32 1, %s4
  %s7 = scalar_select 0, %s6, %s4
  $region1: #{tpu_custom_call.1} parent=0
    #allocation2 [shape = 'u8[32768]{0}', space=vmem, size = 0x8000, scoped, tag = 'input window, operand 0, single buffered']
    #allocation3 [shape = 's32[1]{0}', space=sflag, size = 0x4, scoped, tag = 'scoped memory for tpu_custom_call.1']
    #allocation4 [shape = 's32[1]{0}', space=sflag, size = 0x4, scoped, tag = 'scoped memory for tpu_custom_call.1']
    #allocation5 [shape = 'u8[65536]{0}', space=vmem, size = 0x10000, scoped, tag = 'input window, operand 1, single buffered']
    #allocation6 [shape = 's32[1]{0}', space=sflag, size = 0x4, scoped, tag = 'scoped memory for tpu_custom_call.1']
    #allocation7 [shape = 'u8[32768]{0}', space=vmem, size = 0x8000, scoped, tag = 'output window, operand 0, single buffered']
    %8 = vsyncpa [#allocation3], 0
    %9 = vsyncpa [#allocation6], 0
    %10 = vsyncpa [#allocation4], 0
    // Predicated region
    $region2: #{tpu_custom_call.1} parent=1 // pred_check
      _
    $region3: #{tpu_custom_call.1} parent=1 // pred_check_branch
      %12 = sbr.rel (0) target = $region5
    $region4: #{tpu_custom_call.1} parent=1 // pred_region
      %s14 = ssub.s32 1024, 1024
      %15 = vsyncadd [#allocation3], %s14
      %s16 = sshll.u32 [#allocation2], 4
      %s17 = int_to_ptr.vmem [resolvable:$true] %s16
      %22 = dma.hbm_to_vmem [thread:$0]  %s0, 1024, %s17, [#allocation3], 64, 64, 4
    $region5: #{tpu_custom_call.1} parent=1 // pred_fallthru
      _
    // Predicated region
    $region6: #{tpu_custom_call.1} parent=1 // pred_check
      _
    $region7: #{tpu_custom_call.1} parent=1 // pred_check_branch
      %24 = sbr.rel (0) target = $region9
    $region8: #{tpu_custom_call.1} parent=1 // pred_region
      %s26 = ssub.s32 2048, 2048
      %27 = vsyncadd [#allocation6], %s26
      %s28 = sshll.u32 [#allocation5], 4
      %s29 = int_to_ptr.vmem [resolvable:$true] %s28
      %34 = dma.hbm_to_vmem [thread:$0]  %s1, 2048, %s29, [#allocation6], 128, 128, 8
    $region9: #{tpu_custom_call.1} parent=1 // pred_fallthru
      _
    // Predicated region
    $region10: #{tpu_custom_call.1} parent=1 // pred_check
      _
    $region11: #{tpu_custom_call.1} parent=1 // pred_check_branch
      %36 = sbr.rel (0) target = $region13
    $region12: #{tpu_custom_call.1} parent=1 // pred_region
      _
    $region13: #{tpu_custom_call.1} parent=1 // pred_fallthru
      _
    // Predicated region
    $region14: #{tpu_custom_call.1} parent=1 // pred_check
      _
    $region15: #{tpu_custom_call.1} parent=1 // pred_check_branch
      %38 = sbr.rel (0) target = $region17
    $region16: #{tpu_custom_call.1} parent=1 // pred_region
      %39 = dma.done [#allocation3], 1024
    $region17: #{tpu_custom_call.1} parent=1 // pred_fallthru
      _
    // Predicated region
    $region18: #{tpu_custom_call.1} parent=1 // pred_check
      _
    $region19: #{tpu_custom_call.1} parent=1 // pred_check_branch
      %41 = sbr.rel (0) target = $region21
    $region20: #{tpu_custom_call.1} parent=1 // pred_region
      %42 = dma.done [#allocation6], 2048
    $region21: #{tpu_custom_call.1} parent=1 // pred_fallthru
      _
    %v43 = vld [vmem:[#allocation2] sm:$0x1]
    %v44 = vld [vmem:[#allocation2 + $0x4] sm:$0x1]
    %v45 = vld [vmem:[#allocation2 + $0x8] sm:$0x1]
    %v46 = vld [vmem:[#allocation2 + $0xc] sm:$0x1]
    %v47 = vld [vmem:[#allocation2 + $0x10] sm:$0x1]
    %v48 = vld [vmem:[#allocation2 + $0x14] sm:$0x1]
    %v49 = vld [vmem:[#allocation2 + $0x18] sm:$0x1]
    %v50 = vld [vmem:[#allocation2 + $0x1c] sm:$0x1]
    %v51 = vld [vmem:[#allocation2 + $0x20] sm:$0x1]
    %v52 = vld [vmem:[#allocation2 + $0x24] sm:$0x1]
    %v53 = vld [vmem:[#allocation2 + $0x28] sm:$0x1]
    %v54 = vld [vmem:[#allocation2 + $0x2c] sm:$0x1]
    %v55 = vld [vmem:[#allocation2 + $0x30] sm:$0x1]
    %v56 = vld [vmem:[#allocation2 + $0x34] sm:$0x1]
    %v57 = vld [vmem:[#allocation2 + $0x38] sm:$0x1]
    %v58 = vld [vmem:[#allocation2 + $0x3c] sm:$0x1]
    %v59 = vld [vmem:[#allocation5] sm:$0xff]
    %v60 = vld [vmem:[#allocation5 + $0x8] sm:$0xff]
    %v61 = vld [vmem:[#allocation5 + $0x10] sm:$0xff]
    %v62 = vld [vmem:[#allocation5 + $0x18] sm:$0xff]
    %v63 = vld [vmem:[%s2] sm:$0x1]
    %v65 = vlaneseq
    %v66 = vshrl.u32 %v65, 7
    %v67 = vsub.s32 0, %v66
    %v68 = vrot.slane %v63, %v67
    %v86 = vrot.slane %v44, 7
    %vm87 = vcmask 1041409
    %v88 = vsel %vm87, %v86, %v43
    %v89 = vrot.slane %v45, 6
    %vm90 = vcmask 1042434
    %v91 = vsel %vm90, %v89, %v88
    %v92 = vrot.slane %v46, 5
    %vm93 = vcmask 1043459
    %v94 = vsel %vm93, %v92, %v91
    %v95 = vrot.slane %v47, 4
    %vm96 = vcmask 1044484
    %v97 = vsel %vm96, %v95, %v94
    %v98 = vrot.slane %v48, 3
    %vm99 = vcmask 1045509
    %v100 = vsel %vm99, %v98, %v97
    %v101 = vrot.slane %v49, 2
    %vm102 = vcmask 1046534
    %v103 = vsel %vm102, %v101, %v100
    %v104 = vrot.slane %v50, 1
    %vm105 = vcmask 1047559
    %v106 = vsel %vm105, %v104, %v103
    %v107 = vrot.slane %v52, 7
    %v108 = vsel %vm87, %v107, %v51
    %v109 = vrot.slane %v53, 6
    %v110 = vsel %vm90, %v109, %v108
    %v111 = vrot.slane %v54, 5
    %v112 = vsel %vm93, %v111, %v110
    %v113 = vrot.slane %v55, 4
    %v114 = vsel %vm96, %v113, %v112
    %v115 = vrot.slane %v56, 3
    %v116 = vsel %vm99, %v115, %v114
    %v117 = vrot.slane %v57, 2
    %v118 = vsel %vm102, %v117, %v116
    %v119 = vrot.slane %v58, 1
    %v120 = vsel %vm105, %v119, %v118
    %vm121 = vcmask 261120
    %v122 = vsel %vm121, %v106, 0
    %v124 = vsel %vm121, %v120, 0
    %126 = vmatprep.subr.mxu0 0.0
    %127 = vmatpush1.msra.mxu0 %v59
    %128 = vmatprep.subr.mxu0 0.0
    %129 = vmatpush1.msra.mxu0 %v60
    %130 = vmatprep.subr.mxu0 0.0
    %131 = vmatpush1.msra.mxu0 %v61
    %132 = vmatprep.subr.mxu0 0.0
    %133 = vmatpush1.msra.mxu0 %v62
    %134 = vmatprep.subr.mxu0 0.0
    %135 = vmatpush1.msra.mxu0 0.0
    %136 = vmatprep.subr.mxu0 0.0
    %137 = vmatpush1.msra.mxu0 0.0
    %138 = vmatprep.subr.mxu0 0.0
    %139 = vmatpush1.msra.mxu0 0.0
    %140 = vmatprep.subr.mxu0 0.0
    %141 = vmatpush1.msra.mxu0 0.0
    %142 = vmatprep.subr.mxu0 0.0
    %143 = vmatpush1.msra.mxu0 0.0
    %144 = vmatprep.subr.mxu0 0.0
    %145 = vmatpush1.msra.mxu0 0.0
    %146 = vmatprep.subr.mxu0 0.0
    %147 = vmatpush1.msra.mxu0 0.0
    %148 = vmatprep.subr.mxu0 0.0
    %149 = vmatpush1.msra.mxu0 0.0
    %150 = vmatprep.subr.mxu0 0.0
    %151 = vmatpush1.msra.mxu0 0.0
    %152 = vmatprep.subr.mxu0 0.0
    %153 = vmatpush1.msra.mxu0 0.0
    %154 = vmatprep.subr.mxu0 0.0
    %155 = vmatpush1.msra.mxu0 0.0
    %156 = vmatprep.subr.mxu0 0.0
    %157 = vmatpush1.msra.mxu0 0.0
    %158 = vmatprep.subr.mxu0 0.0
    %159 = vmatpush1.msra.mxu0 0.0
    %160 = vmatprep.subr.mxu0 0.0
    %161 = vmatpush1.msra.mxu0 0.0
    %162 = vmatprep.subr.mxu0 0.0
    %163 = vmatpush1.msra.mxu0 0.0
    %164 = vmatprep.subr.mxu0 0.0
    %165 = vmatpush1.msra.mxu0 0.0
    %166 = vmatprep.subr.mxu0 0.0
    %167 = vmatpush1.msra.mxu0 0.0
    %168 = vmatprep.subr.mxu0 0.0
    %169 = vmatpush1.msra.mxu0 0.0
    %170 = vmatprep.subr.mxu0 0.0
    %171 = vmatpush1.msra.mxu0 0.0
    %172 = vmatprep.subr.mxu0 0.0
    %173 = vmatpush1.msra.mxu0 0.0
    %174 = vmatprep.subr.mxu0 0.0
    %175 = vmatpush1.msra.mxu0 0.0
    %176 = vmatprep.subr.mxu0 0.0
    %177 = vmatpush1.msra.mxu0 0.0
    %178 = vmatprep.subr.mxu0 0.0
    %179 = vmatpush1.msra.mxu0 0.0
    %180 = vmatprep.subr.mxu0 0.0
    %181 = vmatpush1.msra.mxu0 0.0
    %182 = vmatprep.subr.mxu0 0.0
    %183 = vmatpush1.msra.mxu0 0.0
    %184 = vmatprep.subr.mxu0 0.0
    %185 = vmatpush1.msra.mxu0 0.0
    %186 = vmatprep.subr.mxu0 0.0
    %187 = vmatpush1.msra.mxu0 0.0
    %188 = vmatprep.subr.mxu0 0.0
    %189 = vmatpush1.msra.mxu0 0.0
    %190 = vmatprep.mubr.f32.mxu0 0.0
    %191 = vmatmul.mubr.f32.gmra.mrb[0].mxu0 %v122
    %v192 = vpop.f32.mrb[0].mxu0
    %v193 = vadd.f32 %v68, %v192
    %v194 = vpop.f32.mrb[0].mxu0
    %195 = vmatprep.mubr.f32.mxu0 0.0
    %196 = vmatmul.mubr.f32.gmra.mrb[0].mxu0 %v124
    %v197 = vpop.f32.mrb[0].mxu0
    %v198 = vadd.f32 %v68, %v197
    %v199 = vpop.f32.mrb[0].mxu0
    %200 = vdwg.mxu0
    %v203 = vcombine.high %v193, %v193
    %v205 = vunpack.c.l.s4 1966171168
    %v206 = vunpack.c.0.s8 %v205
    %v207 = vlaneseq
    %v208 = vshrl.u32 %v207, 7
    %v209 = vsub.s32 %v206, %v208
    %v210 = vrot.slane %v193, %v209
    %v212 = vunpack.c.l.s4 1966171168
    %v213 = vunpack.c.0.s8 %v212
    %v214 = vlaneseq
    %v215 = vshrl.u32 %v214, 7
    %v216 = vsub.s32 %v213, %v215
    %v217 = vrot.slane %v203, %v216
    %v218 = vcombine.high %v210, %v210
    %v219 = vcombine.high %v217, %v217
    %v221 = vunpack.c.l.s4 1966171168
    %v222 = vunpack.c.0.s8 %v221
    %v223 = vlaneseq
    %v224 = vshrl.u32 %v223, 7
    %v225 = vsub.s32 %v222, %v224
    %v226 = vrot.slane %v210, %v225
    %v228 = vunpack.c.l.s4 1966171168
    %v229 = vunpack.c.0.s8 %v228
    %v230 = vlaneseq
    %v231 = vshrl.u32 %v230, 7
    %v232 = vsub.s32 %v229, %v231
    %v233 = vrot.slane %v217, %v232
    %v235 = vunpack.c.l.s4 1966171168
    %v236 = vunpack.c.0.s8 %v235
    %v237 = vlaneseq
    %v238 = vshrl.u32 %v237, 7
    %v239 = vsub.s32 %v236, %v238
    %v240 = vrot.slane %v218, %v239
    %v242 = vunpack.c.l.s4 1966171168
    %v243 = vunpack.c.0.s8 %v242
    %v244 = vlaneseq
    %v245 = vshrl.u32 %v244, 7
    %v246 = vsub.s32 %v243, %v245
    %v247 = vrot.slane %v219, %v246
    %v248 = vcombine.high %v226, %v226
    %v249 = vcombine.high %v233, %v233
    %v250 = vcombine.high %v240, %v240
    %v251 = vcombine.high %v247, %v247
    %v252 = vcombine.high %v198, %v198
    %v254 = vunpack.c.l.s4 1966171168
    %v255 = vunpack.c.0.s8 %v254
    %v256 = vlaneseq
    %v257 = vshrl.u32 %v256, 7
    %v258 = vsub.s32 %v255, %v257
    %v259 = vrot.slane %v198, %v258
    %v261 = vunpack.c.l.s4 1966171168
    %v262 = vunpack.c.0.s8 %v261
    %v263 = vlaneseq
    %v264 = vshrl.u32 %v263, 7
    %v265 = vsub.s32 %v262, %v264
    %v266 = vrot.slane %v252, %v265
    %v267 = vcombine.high %v259, %v259
    %v268 = vcombine.high %v266, %v266
    %v270 = vunpack.c.l.s4 1966171168
    %v271 = vunpack.c.0.s8 %v270
    %v272 = vlaneseq
    %v273 = vshrl.u32 %v272, 7
    %v274 = vsub.s32 %v271, %v273
    %v275 = vrot.slane %v259, %v274
    %v277 = vunpack.c.l.s4 1966171168
    %v278 = vunpack.c.0.s8 %v277
    %v279 = vlaneseq
    %v280 = vshrl.u32 %v279, 7
    %v281 = vsub.s32 %v278, %v280
    %v282 = vrot.slane %v266, %v281
    %v284 = vunpack.c.l.s4 1966171168
    %v285 = vunpack.c.0.s8 %v284
    %v286 = vlaneseq
    %v287 = vshrl.u32 %v286, 7
    %v288 = vsub.s32 %v285, %v287
    %v289 = vrot.slane %v267, %v288
    %v291 = vunpack.c.l.s4 1966171168
    %v292 = vunpack.c.0.s8 %v291
    %v293 = vlaneseq
    %v294 = vshrl.u32 %v293, 7
    %v295 = vsub.s32 %v292, %v294
    %v296 = vrot.slane %v268, %v295
    %v297 = vcombine.high %v275, %v275
    %v298 = vcombine.high %v282, %v282
    %v299 = vcombine.high %v289, %v289
    %v300 = vcombine.high %v296, %v296
    %vm317 = vcmask 253952
    %318 = vst.msk [vmem:[#allocation7] sm:$0x1] %vm317, %v226
    %319 = vst.msk [vmem:[#allocation7 + $0x4] sm:$0x1] %vm317, %v240
    %320 = vst.msk [vmem:[#allocation7 + $0x8] sm:$0x1] %vm317, %v248
    %321 = vst.msk [vmem:[#allocation7 + $0xc] sm:$0x1] %vm317, %v250
    %322 = vst.msk [vmem:[#allocation7 + $0x10] sm:$0x1] %vm317, %v233
    %323 = vst.msk [vmem:[#allocation7 + $0x14] sm:$0x1] %vm317, %v247
    %324 = vst.msk [vmem:[#allocation7 + $0x18] sm:$0x1] %vm317, %v249
    %325 = vst.msk [vmem:[#allocation7 + $0x1c] sm:$0x1] %vm317, %v251
    %326 = vst.msk [vmem:[#allocation7 + $0x20] sm:$0x1] %vm317, %v275
    %327 = vst.msk [vmem:[#allocation7 + $0x24] sm:$0x1] %vm317, %v289
    %328 = vst.msk [vmem:[#allocation7 + $0x28] sm:$0x1] %vm317, %v297
    %329 = vst.msk [vmem:[#allocation7 + $0x2c] sm:$0x1] %vm317, %v299
    %330 = vst.msk [vmem:[#allocation7 + $0x30] sm:$0x1] %vm317, %v282
    %331 = vst.msk [vmem:[#allocation7 + $0x34] sm:$0x1] %vm317, %v296
    %332 = vst.msk [vmem:[#allocation7 + $0x38] sm:$0x1] %vm317, %v298
    %333 = vst.msk [vmem:[#allocation7 + $0x3c] sm:$0x1] %vm317, %v300
    %v334 = vld [vmem:[#allocation2 + $0x1] sm:$0x1]
    %v335 = vld [vmem:[#allocation2 + $0x5] sm:$0x1]
    %v336 = vld [vmem:[#allocation2 + $0x9] sm:$0x1]
    %v337 = vld [vmem:[#allocation2 + $0xd] sm:$0x1]
    %v338 = vld [vmem:[#allocation2 + $0x11] sm:$0x1]
    %v339 = vld [vmem:[#allocation2 + $0x15] sm:$0x1]
    %v340 = vld [vmem:[#allocation2 + $0x19] sm:$0x1]
    %v341 = vld [vmem:[#allocation2 + $0x1d] sm:$0x1]
    %v342 = vld [vmem:[#allocation2 + $0x21] sm:$0x1]
    %v343 = vld [vmem:[#allocation2 + $0x25] sm:$0x1]
    %v344 = vld [vmem:[#allocation2 + $0x29] sm:$0x1]
    %v345 = vld [vmem:[#allocation2 + $0x2d] sm:$0x1]
    %v346 = vld [vmem:[#allocation2 + $0x31] sm:$0x1]
    %v347 = vld [vmem:[#allocation2 + $0x35] sm:$0x1]
    %v348 = vld [vmem:[#allocation2 + $0x39] sm:$0x1]
    %v349 = vld [vmem:[#allocation2 + $0x3d] sm:$0x1]
    %s350 = scalar_lea.vmem [#allocation5], 32
    %v351 = vld [vmem:[%s350] sm:$0xff]
    %v352 = vld [vmem:[%s350 + $0x8] sm:$0xff]
    %v353 = vld [vmem:[%s350 + $0x10] sm:$0xff]
    %v354 = vld [vmem:[%s350 + $0x18] sm:$0xff]
    %s355 = scalar_lea.vmem %s2, 1
    %v356 = vld [vmem:[%s355] sm:$0x1]
    %v358 = vlaneseq
    %v359 = vshrl.u32 %v358, 7
    %v360 = vsub.s32 0, %v359
    %v361 = vrot.slane %v356, %v360
    %v379 = vrot.slane %v335, 7
    %v380 = vsel %vm87, %v379, %v334
    %v381 = vrot.slane %v336, 6
    %v382 = vsel %vm90, %v381, %v380
    %v383 = vrot.slane %v337, 5
    %v384 = vsel %vm93, %v383, %v382
    %v385 = vrot.slane %v338, 4
    %v386 = vsel %vm96, %v385, %v384
    %v387 = vrot.slane %v339, 3
    %v388 = vsel %vm99, %v387, %v386
    %v389 = vrot.slane %v340, 2
    %v390 = vsel %vm102, %v389, %v388
    %v391 = vrot.slane %v341, 1
    %v392 = vsel %vm105, %v391, %v390
    %v393 = vrot.slane %v343, 7
    %v394 = vsel %vm87, %v393, %v342
    %v395 = vrot.slane %v344, 6
    %v396 = vsel %vm90, %v395, %v394
    %v397 = vrot.slane %v345, 5
    %v398 = vsel %vm93, %v397, %v396
    %v399 = vrot.slane %v346, 4
    %v400 = vsel %vm96, %v399, %v398
    %v401 = vrot.slane %v347, 3
    %v402 = vsel %vm99, %v401, %v400
    %v403 = vrot.slane %v348, 2
    %v404 = vsel %vm102, %v403, %v402
    %v405 = vrot.slane %v349, 1
    %v406 = vsel %vm105, %v405, %v404
    %v407 = vsel %vm121, %v392, 0
    %v409 = vsel %vm121, %v406, 0
    %411 = vmatprep.subr.mxu0 0.0
    %412 = vmatpush1.msra.mxu0 %v351
    %413 = vmatprep.subr.mxu0 0.0
    %414 = vmatpush1.msra.mxu0 %v352
    %415 = vmatprep.subr.mxu0 0.0
    %416 = vmatpush1.msra.mxu0 %v353
    %417 = vmatprep.subr.mxu0 0.0
    %418 = vmatpush1.msra.mxu0 %v354
    %419 = vmatprep.subr.mxu0 0.0
    %420 = vmatpush1.msra.mxu0 0.0
    %421 = vmatprep.subr.mxu0 0.0
    %422 = vmatpush1.msra.mxu0 0.0
    %423 = vmatprep.subr.mxu0 0.0
    %424 = vmatpush1.msra.mxu0 0.0
    %425 = vmatprep.subr.mxu0 0.0
    %426 = vmatpush1.msra.mxu0 0.0
    %427 = vmatprep.subr.mxu0 0.0
    %428 = vmatpush1.msra.mxu0 0.0
    %429 = vmatprep.subr.mxu0 0.0
    %430 = vmatpush1.msra.mxu0 0.0
    %431 = vmatprep.subr.mxu0 0.0
    %432 = vmatpush1.msra.mxu0 0.0
    %433 = vmatprep.subr.mxu0 0.0
    %434 = vmatpush1.msra.mxu0 0.0
    %435 = vmatprep.subr.mxu0 0.0
    %436 = vmatpush1.msra.mxu0 0.0
    %437 = vmatprep.subr.mxu0 0.0
    %438 = vmatpush1.msra.mxu0 0.0
    %439 = vmatprep.subr.mxu0 0.0
    %440 = vmatpush1.msra.mxu0 0.0
    %441 = vmatprep.subr.mxu0 0.0
    %442 = vmatpush1.msra.mxu0 0.0
    %443 = vmatprep.subr.mxu0 0.0
    %444 = vmatpush1.msra.mxu0 0.0
    %445 = vmatprep.subr.mxu0 0.0
    %446 = vmatpush1.msra.mxu0 0.0
    %447 = vmatprep.subr.mxu0 0.0
    %448 = vmatpush1.msra.mxu0 0.0
    %449 = vmatprep.subr.mxu0 0.0
    %450 = vmatpush1.msra.mxu0 0.0
    %451 = vmatprep.subr.mxu0 0.0
    %452 = vmatpush1.msra.mxu0 0.0
    %453 = vmatprep.subr.mxu0 0.0
    %454 = vmatpush1.msra.mxu0 0.0
    %455 = vmatprep.subr.mxu0 0.0
    %456 = vmatpush1.msra.mxu0 0.0
    %457 = vmatprep.subr.mxu0 0.0
    %458 = vmatpush1.msra.mxu0 0.0
    %459 = vmatprep.subr.mxu0 0.0
    %460 = vmatpush1.msra.mxu0 0.0
    %461 = vmatprep.subr.mxu0 0.0
    %462 = vmatpush1.msra.mxu0 0.0
    %463 = vmatprep.subr.mxu0 0.0
    %464 = vmatpush1.msra.mxu0 0.0
    %465 = vmatprep.subr.mxu0 0.0
    %466 = vmatpush1.msra.mxu0 0.0
    %467 = vmatprep.subr.mxu0 0.0
    %468 = vmatpush1.msra.mxu0 0.0
    %469 = vmatprep.subr.mxu0 0.0
    %470 = vmatpush1.msra.mxu0 0.0
    %471 = vmatprep.subr.mxu0 0.0
    %472 = vmatpush1.msra.mxu0 0.0
    %473 = vmatprep.subr.mxu0 0.0
    %474 = vmatpush1.msra.mxu0 0.0
    %475 = vmatprep.mubr.f32.mxu0 0.0
    %476 = vmatmul.mubr.f32.gmra.mrb[0].mxu0 %v407
    %v477 = vpop.f32.mrb[0].mxu0
    %v478 = vadd.f32 %v361, %v477
    %v479 = vpop.f32.mrb[0].mxu0
    %480 = vmatprep.mubr.f32.mxu0 0.0
    %481 = vmatmul.mubr.f32.gmra.mrb[0].mxu0 %v409
    %v482 = vpop.f32.mrb[0].mxu0
    %v483 = vadd.f32 %v361, %v482
    %v484 = vpop.f32.mrb[0].mxu0
    %485 = vdwg.mxu0
    %v488 = vcombine.high %v478, %v478
    %v490 = vunpack.c.l.s4 1966171168
    %v491 = vunpack.c.0.s8 %v490
    %v492 = vlaneseq
    %v493 = vshrl.u32 %v492, 7
    %v494 = vsub.s32 %v491, %v493
    %v495 = vrot.slane %v478, %v494
    %v497 = vunpack.c.l.s4 1966171168
    %v498 = vunpack.c.0.s8 %v497
    %v499 = vlaneseq
    %v500 = vshrl.u32 %v499, 7
    %v501 = vsub.s32 %v498, %v500
    %v502 = vrot.slane %v488, %v501
    %v503 = vcombine.high %v495, %v495
    %v504 = vcombine.high %v502, %v502
    %v506 = vunpack.c.l.s4 1966171168
    %v507 = vunpack.c.0.s8 %v506
    %v508 = vlaneseq
    %v509 = vshrl.u32 %v508, 7
    %v510 = vsub.s32 %v507, %v509
    %v511 = vrot.slane %v495, %v510
    %v513 = vunpack.c.l.s4 1966171168
    %v514 = vunpack.c.0.s8 %v513
    %v515 = vlaneseq
    %v516 = vshrl.u32 %v515, 7
    %v517 = vsub.s32 %v514, %v516
    %v518 = vrot.slane %v502, %v517
    %v520 = vunpack.c.l.s4 1966171168
    %v521 = vunpack.c.0.s8 %v520
    %v522 = vlaneseq
    %v523 = vshrl.u32 %v522, 7
    %v524 = vsub.s32 %v521, %v523
    %v525 = vrot.slane %v503, %v524
    %v527 = vunpack.c.l.s4 1966171168
    %v528 = vunpack.c.0.s8 %v527
    %v529 = vlaneseq
    %v530 = vshrl.u32 %v529, 7
    %v531 = vsub.s32 %v528, %v530
    %v532 = vrot.slane %v504, %v531
    %v533 = vcombine.high %v511, %v511
    %v534 = vcombine.high %v518, %v518
    %v535 = vcombine.high %v525, %v525
    %v536 = vcombine.high %v532, %v532
    %v537 = vcombine.high %v483, %v483
    %v539 = vunpack.c.l.s4 1966171168
    %v540 = vunpack.c.0.s8 %v539
    %v541 = vlaneseq
    %v542 = vshrl.u32 %v541, 7
    %v543 = vsub.s32 %v540, %v542
    %v544 = vrot.slane %v483, %v543
    %v546 = vunpack.c.l.s4 1966171168
    %v547 = vunpack.c.0.s8 %v546
    %v548 = vlaneseq
    %v549 = vshrl.u32 %v548, 7
    %v550 = vsub.s32 %v547, %v549
    %v551 = vrot.slane %v537, %v550
    %v552 = vcombine.high %v544, %v544
    %v553 = vcombine.high %v551, %v551
    %v555 = vunpack.c.l.s4 1966171168
    %v556 = vunpack.c.0.s8 %v555
    %v557 = vlaneseq
    %v558 = vshrl.u32 %v557, 7
    %v559 = vsub.s32 %v556, %v558
    %v560 = vrot.slane %v544, %v559
    %v562 = vunpack.c.l.s4 1966171168
    %v563 = vunpack.c.0.s8 %v562
    %v564 = vlaneseq
    %v565 = vshrl.u32 %v564, 7
    %v566 = vsub.s32 %v563, %v565
    %v567 = vrot.slane %v551, %v566
    %v569 = vunpack.c.l.s4 1966171168
    %v570 = vunpack.c.0.s8 %v569
    %v571 = vlaneseq
    %v572 = vshrl.u32 %v571, 7
    %v573 = vsub.s32 %v570, %v572
    %v574 = vrot.slane %v552, %v573
    %v576 = vunpack.c.l.s4 1966171168
    %v577 = vunpack.c.0.s8 %v576
    %v578 = vlaneseq
    %v579 = vshrl.u32 %v578, 7
    %v580 = vsub.s32 %v577, %v579
    %v581 = vrot.slane %v553, %v580
    %v582 = vcombine.high %v560, %v560
    %v583 = vcombine.high %v567, %v567
    %v584 = vcombine.high %v574, %v574
    %v585 = vcombine.high %v581, %v581
    %602 = vst.msk [vmem:[#allocation7 + $0x1] sm:$0x1] %vm317, %v511
    %603 = vst.msk [vmem:[#allocation7 + $0x5] sm:$0x1] %vm317, %v525
    %604 = vst.msk [vmem:[#allocation7 + $0x9] sm:$0x1] %vm317, %v533
    %605 = vst.msk [vmem:[#allocation7 + $0xd] sm:$0x1] %vm317, %v535
    %606 = vst.msk [vmem:[#allocation7 + $0x11] sm:$0x1] %vm317, %v518
    %607 = vst.msk [vmem:[#allocation7 + $0x15] sm:$0x1] %vm317, %v532
    %608 = vst.msk [vmem:[#allocation7 + $0x19] sm:$0x1] %vm317, %v534
    %609 = vst.msk [vmem:[#allocation7 + $0x1d] sm:$0x1] %vm317, %v536
    %610 = vst.msk [vmem:[#allocation7 + $0x21] sm:$0x1] %vm317, %v560
    %611 = vst.msk [vmem:[#allocation7 + $0x25] sm:$0x1] %vm317, %v574
    %612 = vst.msk [vmem:[#allocation7 + $0x29] sm:$0x1] %vm317, %v582
    %613 = vst.msk [vmem:[#allocation7 + $0x2d] sm:$0x1] %vm317, %v584
    %614 = vst.msk [vmem:[#allocation7 + $0x31] sm:$0x1] %vm317, %v567
    %615 = vst.msk [vmem:[#allocation7 + $0x35] sm:$0x1] %vm317, %v581
    %616 = vst.msk [vmem:[#allocation7 + $0x39] sm:$0x1] %vm317, %v583
    %617 = vst.msk [vmem:[#allocation7 + $0x3d] sm:$0x1] %vm317, %v585
    %v618 = vld [vmem:[#allocation2 + $0x2] sm:$0x1]
    %v619 = vld [vmem:[#allocation2 + $0x6] sm:$0x1]
    %v620 = vld [vmem:[#allocation2 + $0xa] sm:$0x1]
    %v621 = vld [vmem:[#allocation2 + $0xe] sm:$0x1]
    %v622 = vld [vmem:[#allocation2 + $0x12] sm:$0x1]
    %v623 = vld [vmem:[#allocation2 + $0x16] sm:$0x1]
    %v624 = vld [vmem:[#allocation2 + $0x1a] sm:$0x1]
    %v625 = vld [vmem:[#allocation2 + $0x1e] sm:$0x1]
    %v626 = vld [vmem:[#allocation2 + $0x22] sm:$0x1]
    %v627 = vld [vmem:[#allocation2 + $0x26] sm:$0x1]
    %v628 = vld [vmem:[#allocation2 + $0x2a] sm:$0x1]
    %v629 = vld [vmem:[#allocation2 + $0x2e] sm:$0x1]
    %v630 = vld [vmem:[#allocation2 + $0x32] sm:$0x1]
    %v631 = vld [vmem:[#allocation2 + $0x36] sm:$0x1]
    %v632 = vld [vmem:[#allocation2 + $0x3a] sm:$0x1]
    %v633 = vld [vmem:[#allocation2 + $0x3e] sm:$0x1]
    %s634 = scalar_lea.vmem [#allocation5], 64
    %v635 = vld [vmem:[%s634] sm:$0xff]
    %v636 = vld [vmem:[%s634 + $0x8] sm:$0xff]
    %v637 = vld [vmem:[%s634 + $0x10] sm:$0xff]
    %v638 = vld [vmem:[%s634 + $0x18] sm:$0xff]
    %s639 = scalar_lea.vmem %s2, 2
    %v640 = vld [vmem:[%s639] sm:$0x1]
    %v642 = vlaneseq
    %v643 = vshrl.u32 %v642, 7
    %v644 = vsub.s32 0, %v643
    %v645 = vrot.slane %v640, %v644
    %v663 = vrot.slane %v619, 7
    %v664 = vsel %vm87, %v663, %v618
    %v665 = vrot.slane %v620, 6
    %v666 = vsel %vm90, %v665, %v664
    %v667 = vrot.slane %v621, 5
    %v668 = vsel %vm93, %v667, %v666
    %v669 = vrot.slane %v622, 4
    %v670 = vsel %vm96, %v669, %v668
    %v671 = vrot.slane %v623, 3
    %v672 = vsel %vm99, %v671, %v670
    %v673 = vrot.slane %v624, 2
    %v674 = vsel %vm102, %v673, %v672
    %v675 = vrot.slane %v625, 1
    %v676 = vsel %vm105, %v675, %v674
    %v677 = vrot.slane %v627, 7
    %v678 = vsel %vm87, %v677, %v626
    %v679 = vrot.slane %v628, 6
    %v680 = vsel %vm90, %v679, %v678
    %v681 = vrot.slane %v629, 5
    %v682 = vsel %vm93, %v681, %v680
    %v683 = vrot.slane %v630, 4
    %v684 = vsel %vm96, %v683, %v682
    %v685 = vrot.slane %v631, 3
    %v686 = vsel %vm99, %v685, %v684
    %v687 = vrot.slane %v632, 2
    %v688 = vsel %vm102, %v687, %v686
    %v689 = vrot.slane %v633, 1
    %v690 = vsel %vm105, %v689, %v688
    %v691 = vsel %vm121, %v676, 0
    %v693 = vsel %vm121, %v690, 0
    %695 = vmatprep.subr.mxu0 0.0
    %696 = vmatpush1.msra.mxu0 %v635
    %697 = vmatprep.subr.mxu0 0.0
    %698 = vmatpush1.msra.mxu0 %v636
    %699 = vmatprep.subr.mxu0 0.0
    %700 = vmatpush1.msra.mxu0 %v637
    %701 = vmatprep.subr.mxu0 0.0
    %702 = vmatpush1.msra.mxu0 %v638
    %703 = vmatprep.subr.mxu0 0.0
    %704 = vmatpush1.msra.mxu0 0.0
    %705 = vmatprep.subr.mxu0 0.0
    %706 = vmatpush1.msra.mxu0 0.0
    %707 = vmatprep.subr.mxu0 0.0
    %708 = vmatpush1.msra.mxu0 0.0
    %709 = vmatprep.subr.mxu0 0.0
    %710 = vmatpush1.msra.mxu0 0.0
    %711 = vmatprep.subr.mxu0 0.0
    %712 = vmatpush1.msra.mxu0 0.0
    %713 = vmatprep.subr.mxu0 0.0
    %714 = vmatpush1.msra.mxu0 0.0
    %715 = vmatprep.subr.mxu0 0.0
    %716 = vmatpush1.msra.mxu0 0.0
    %717 = vmatprep.subr.mxu0 0.0
    %718 = vmatpush1.msra.mxu0 0.0
    %719 = vmatprep.subr.mxu0 0.0
    %720 = vmatpush1.msra.mxu0 0.0
    %721 = vmatprep.subr.mxu0 0.0
    %722 = vmatpush1.msra.mxu0 0.0
    %723 = vmatprep.subr.mxu0 0.0
    %724 = vmatpush1.msra.mxu0 0.0
    %725 = vmatprep.subr.mxu0 0.0
    %726 = vmatpush1.msra.mxu0 0.0
    %727 = vmatprep.subr.mxu0 0.0
    %728 = vmatpush1.msra.mxu0 0.0
    %729 = vmatprep.subr.mxu0 0.0
    %730 = vmatpush1.msra.mxu0 0.0
    %731 = vmatprep.subr.mxu0 0.0
    %732 = vmatpush1.msra.mxu0 0.0
    %733 = vmatprep.subr.mxu0 0.0
    %734 = vmatpush1.msra.mxu0 0.0
    %735 = vmatprep.subr.mxu0 0.0
    %736 = vmatpush1.msra.mxu0 0.0
    %737 = vmatprep.subr.mxu0 0.0
    %738 = vmatpush1.msra.mxu0 0.0
    %739 = vmatprep.subr.mxu0 0.0
    %740 = vmatpush1.msra.mxu0 0.0
    %741 = vmatprep.subr.mxu0 0.0
    %742 = vmatpush1.msra.mxu0 0.0
    %743 = vmatprep.subr.mxu0 0.0
    %744 = vmatpush1.msra.mxu0 0.0
    %745 = vmatprep.subr.mxu0 0.0
    %746 = vmatpush1.msra.mxu0 0.0
    %747 = vmatprep.subr.mxu0 0.0
    %748 = vmatpush1.msra.mxu0 0.0
    %749 = vmatprep.subr.mxu0 0.0
    %750 = vmatpush1.msra.mxu0 0.0
    %751 = vmatprep.subr.mxu0 0.0
    %752 = vmatpush1.msra.mxu0 0.0
    %753 = vmatprep.subr.mxu0 0.0
    %754 = vmatpush1.msra.mxu0 0.0
    %755 = vmatprep.subr.mxu0 0.0
    %756 = vmatpush1.msra.mxu0 0.0
    %757 = vmatprep.subr.mxu0 0.0
    %758 = vmatpush1.msra.mxu0 0.0
    %759 = vmatprep.mubr.f32.mxu0 0.0
    %760 = vmatmul.mubr.f32.gmra.mrb[0].mxu0 %v691
    %v761 = vpop.f32.mrb[0].mxu0
    %v762 = vadd.f32 %v645, %v761
    %v763 = vpop.f32.mrb[0].mxu0
    %764 = vmatprep.mubr.f32.mxu0 0.0
    %765 = vmatmul.mubr.f32.gmra.mrb[0].mxu0 %v693
    %v766 = vpop.f32.mrb[0].mxu0
    %v767 = vadd.f32 %v645, %v766
    %v768 = vpop.f32.mrb[0].mxu0
    %769 = vdwg.mxu0
    %v772 = vcombine.high %v762, %v762
    %v774 = vunpack.c.l.s4 1966171168
    %v775 = vunpack.c.0.s8 %v774
    %v776 = vlaneseq
    %v777 = vshrl.u32 %v776, 7
    %v778 = vsub.s32 %v775, %v777
    %v779 = vrot.slane %v762, %v778
    %v781 = vunpack.c.l.s4 1966171168
    %v782 = vunpack.c.0.s8 %v781
    %v783 = vlaneseq
    %v784 = vshrl.u32 %v783, 7
    %v785 = vsub.s32 %v782, %v784
    %v786 = vrot.slane %v772, %v785
    %v787 = vcombine.high %v779, %v779
    %v788 = vcombine.high %v786, %v786
    %v790 = vunpack.c.l.s4 1966171168
    %v791 = vunpack.c.0.s8 %v790
    %v792 = vlaneseq
    %v793 = vshrl.u32 %v792, 7
    %v794 = vsub.s32 %v791, %v793
    %v795 = vrot.slane %v779, %v794
    %v797 = vunpack.c.l.s4 1966171168
    %v798 = vunpack.c.0.s8 %v797
    %v799 = vlaneseq
    %v800 = vshrl.u32 %v799, 7
    %v801 = vsub.s32 %v798, %v800
    %v802 = vrot.slane %v786, %v801
    %v804 = vunpack.c.l.s4 1966171168
    %v805 = vunpack.c.0.s8 %v804
    %v806 = vlaneseq
    %v807 = vshrl.u32 %v806, 7
    %v808 = vsub.s32 %v805, %v807
    %v809 = vrot.slane %v787, %v808
    %v811 = vunpack.c.l.s4 1966171168
    %v812 = vunpack.c.0.s8 %v811
    %v813 = vlaneseq
    %v814 = vshrl.u32 %v813, 7
    %v815 = vsub.s32 %v812, %v814
    %v816 = vrot.slane %v788, %v815
    %v817 = vcombine.high %v795, %v795
    %v818 = vcombine.high %v802, %v802
    %v819 = vcombine.high %v809, %v809
    %v820 = vcombine.high %v816, %v816
    %v821 = vcombine.high %v767, %v767
    %v823 = vunpack.c.l.s4 1966171168
    %v824 = vunpack.c.0.s8 %v823
    %v825 = vlaneseq
    %v826 = vshrl.u32 %v825, 7
    %v827 = vsub.s32 %v824, %v826
    %v828 = vrot.slane %v767, %v827
    %v830 = vunpack.c.l.s4 1966171168
    %v831 = vunpack.c.0.s8 %v830
    %v832 = vlaneseq
    %v833 = vshrl.u32 %v832, 7
    %v834 = vsub.s32 %v831, %v833
    %v835 = vrot.slane %v821, %v834
    %v836 = vcombine.high %v828, %v828
    %v837 = vcombine.high %v835, %v835
    %v839 = vunpack.c.l.s4 1966171168
    %v840 = vunpack.c.0.s8 %v839
    %v841 = vlaneseq
    %v842 = vshrl.u32 %v841, 7
    %v843 = vsub.s32 %v840, %v842
    %v844 = vrot.slane %v828, %v843
    %v846 = vunpack.c.l.s4 1966171168
    %v847 = vunpack.c.0.s8 %v846
    %v848 = vlaneseq
    %v849 = vshrl.u32 %v848, 7
    %v850 = vsub.s32 %v847, %v849
    %v851 = vrot.slane %v835, %v850
    %v853 = vunpack.c.l.s4 1966171168
    %v854 = vunpack.c.0.s8 %v853
    %v855 = vlaneseq
    %v856 = vshrl.u32 %v855, 7
    %v857 = vsub.s32 %v854, %v856
    %v858 = vrot.slane %v836, %v857
    %v860 = vunpack.c.l.s4 1966171168
    %v861 = vunpack.c.0.s8 %v860
    %v862 = vlaneseq
    %v863 = vshrl.u32 %v862, 7
    %v864 = vsub.s32 %v861, %v863
    %v865 = vrot.slane %v837, %v864
    %v866 = vcombine.high %v844, %v844
    %v867 = vcombine.high %v851, %v851
    %v868 = vcombine.high %v858, %v858
    %v869 = vcombine.high %v865, %v865
    %886 = vst.msk [vmem:[#allocation7 + $0x2] sm:$0x1] %vm317, %v795
    %887 = vst.msk [vmem:[#allocation7 + $0x6] sm:$0x1] %vm317, %v809
    %888 = vst.msk [vmem:[#allocation7 + $0xa] sm:$0x1] %vm317, %v817
    %889 = vst.msk [vmem:[#allocation7 + $0xe] sm:$0x1] %vm317, %v819
    %890 = vst.msk [vmem:[#allocation7 + $0x12] sm:$0x1] %vm317, %v802
    %891 = vst.msk [vmem:[#allocation7 + $0x16] sm:$0x1] %vm317, %v816
    %892 = vst.msk [vmem:[#allocation7 + $0x1a] sm:$0x1] %vm317, %v818
    %893 = vst.msk [vmem:[#allocation7 + $0x1e] sm:$0x1] %vm317, %v820
    %894 = vst.msk [vmem:[#allocation7 + $0x22] sm:$0x1] %vm317, %v844
    %895 = vst.msk [vmem:[#allocation7 + $0x26] sm:$0x1] %vm317, %v858
    %896 = vst.msk [vmem:[#allocation7 + $0x2a] sm:$0x1] %vm317, %v866
    %897 = vst.msk [vmem:[#allocation7 + $0x2e] sm:$0x1] %vm317, %v868
    %898 = vst.msk [vmem:[#allocation7 + $0x32] sm:$0x1] %vm317, %v851
    %899 = vst.msk [vmem:[#allocation7 + $0x36] sm:$0x1] %vm317, %v865
    %900 = vst.msk [vmem:[#allocation7 + $0x3a] sm:$0x1] %vm317, %v867
    %901 = vst.msk [vmem:[#allocation7 + $0x3e] sm:$0x1] %vm317, %v869
    %v902 = vld [vmem:[#allocation2 + $0x3] sm:$0x1]
    %v903 = vld [vmem:[#allocation2 + $0x7] sm:$0x1]
    %v904 = vld [vmem:[#allocation2 + $0xb] sm:$0x1]
    %v905 = vld [vmem:[#allocation2 + $0xf] sm:$0x1]
    %v906 = vld [vmem:[#allocation2 + $0x13] sm:$0x1]
    %v907 = vld [vmem:[#allocation2 + $0x17] sm:$0x1]
    %v908 = vld [vmem:[#allocation2 + $0x1b] sm:$0x1]
    %v909 = vld [vmem:[#allocation2 + $0x1f] sm:$0x1]
    %v910 = vld [vmem:[#allocation2 + $0x23] sm:$0x1]
    %v911 = vld [vmem:[#allocation2 + $0x27] sm:$0x1]
    %v912 = vld [vmem:[#allocation2 + $0x2b] sm:$0x1]
    %v913 = vld [vmem:[#allocation2 + $0x2f] sm:$0x1]
    %v914 = vld [vmem:[#allocation2 + $0x33] sm:$0x1]
    %v915 = vld [vmem:[#allocation2 + $0x37] sm:$0x1]
    %v916 = vld [vmem:[#allocation2 + $0x3b] sm:$0x1]
    %v917 = vld [vmem:[#allocation2 + $0x3f] sm:$0x1]
    %s918 = scalar_lea.vmem [#allocation5], 96
    %v919 = vld [vmem:[%s918] sm:$0xff]
    %v920 = vld [vmem:[%s918 + $0x8] sm:$0xff]
    %v921 = vld [vmem:[%s918 + $0x10] sm:$0xff]
    %v922 = vld [vmem:[%s918 + $0x18] sm:$0xff]
    %s923 = scalar_lea.vmem %s2, 3
    %v924 = vld [vmem:[%s923] sm:$0x1]
    %v926 = vlaneseq
    %v927 = vshrl.u32 %v926, 7
    %v928 = vsub.s32 0, %v927
    %v929 = vrot.slane %v924, %v928
    %v947 = vrot.slane %v903, 7
    %v948 = vsel %vm87, %v947, %v902
    %v949 = vrot.slane %v904, 6
    %v950 = vsel %vm90, %v949, %v948
    %v951 = vrot.slane %v905, 5
    %v952 = vsel %vm93, %v951, %v950
    %v953 = vrot.slane %v906, 4
    %v954 = vsel %vm96, %v953, %v952
    %v955 = vrot.slane %v907, 3
    %v956 = vsel %vm99, %v955, %v954
    %v957 = vrot.slane %v908, 2
    %v958 = vsel %vm102, %v957, %v956
    %v959 = vrot.slane %v909, 1
    %v960 = vsel %vm105, %v959, %v958
    %v961 = vrot.slane %v911, 7
    %v962 = vsel %vm87, %v961, %v910
    %v963 = vrot.slane %v912, 6
    %v964 = vsel %vm90, %v963, %v962
    %v965 = vrot.slane %v913, 5
    %v966 = vsel %vm93, %v965, %v964
    %v967 = vrot.slane %v914, 4
    %v968 = vsel %vm96, %v967, %v966
    %v969 = vrot.slane %v915, 3
    %v970 = vsel %vm99, %v969, %v968
    %v971 = vrot.slane %v916, 2
    %v972 = vsel %vm102, %v971, %v970
    %v973 = vrot.slane %v917, 1
    %v974 = vsel %vm105, %v973, %v972
    %v975 = vsel %vm121, %v960, 0
    %v977 = vsel %vm121, %v974, 0
    %979 = vmatprep.subr.mxu0 0.0
    %980 = vmatpush1.msra.mxu0 %v919
    %981 = vmatprep.subr.mxu0 0.0
    %982 = vmatpush1.msra.mxu0 %v920
    %983 = vmatprep.subr.mxu0 0.0
    %984 = vmatpush1.msra.mxu0 %v921
    %985 = vmatprep.subr.mxu0 0.0
    %986 = vmatpush1.msra.mxu0 %v922
    %987 = vmatprep.subr.mxu0 0.0
    %988 = vmatpush1.msra.mxu0 0.0
    %989 = vmatprep.subr.mxu0 0.0
    %990 = vmatpush1.msra.mxu0 0.0
    %991 = vmatprep.subr.mxu0 0.0
    %992 = vmatpush1.msra.mxu0 0.0
    %993 = vmatprep.subr.mxu0 0.0
    %994 = vmatpush1.msra.mxu0 0.0
    %995 = vmatprep.subr.mxu0 0.0
    %996 = vmatpush1.msra.mxu0 0.0
    %997 = vmatprep.subr.mxu0 0.0
    %998 = vmatpush1.msra.mxu0 0.0
    %999 = vmatprep.subr.mxu0 0.0
    %1000 = vmatpush1.msra.mxu0 0.0
    %1001 = vmatprep.subr.mxu0 0.0
    %1002 = vmatpush1.msra.mxu0 0.0
    %1003 = vmatprep.subr.mxu0 0.0
    %1004 = vmatpush1.msra.mxu0 0.0
    %1005 = vmatprep.subr.mxu0 0.0
    %1006 = vmatpush1.msra.mxu0 0.0
    %1007 = vmatprep.subr.mxu0 0.0
    %1008 = vmatpush1.msra.mxu0 0.0
    %1009 = vmatprep.subr.mxu0 0.0
    %1010 = vmatpush1.msra.mxu0 0.0
    %1011 = vmatprep.subr.mxu0 0.0
    %1012 = vmatpush1.msra.mxu0 0.0
    %1013 = vmatprep.subr.mxu0 0.0
    %1014 = vmatpush1.msra.mxu0 0.0
    %1015 = vmatprep.subr.mxu0 0.0
    %1016 = vmatpush1.msra.mxu0 0.0
    %1017 = vmatprep.subr.mxu0 0.0
    %1018 = vmatpush1.msra.mxu0 0.0
    %1019 = vmatprep.subr.mxu0 0.0
    %1020 = vmatpush1.msra.mxu0 0.0
    %1021 = vmatprep.subr.mxu0 0.0
    %1022 = vmatpush1.msra.mxu0 0.0
    %1023 = vmatprep.subr.mxu0 0.0
    %1024 = vmatpush1.msra.mxu0 0.0
    %1025 = vmatprep.subr.mxu0 0.0
    %1026 = vmatpush1.msra.mxu0 0.0
    %1027 = vmatprep.subr.mxu0 0.0
    %1028 = vmatpush1.msra.mxu0 0.0
    %1029 = vmatprep.subr.mxu0 0.0
    %1030 = vmatpush1.msra.mxu0 0.0
    %1031 = vmatprep.subr.mxu0 0.0
    %1032 = vmatpush1.msra.mxu0 0.0
    %1033 = vmatprep.subr.mxu0 0.0
    %1034 = vmatpush1.msra.mxu0 0.0
    %1035 = vmatprep.subr.mxu0 0.0
    %1036 = vmatpush1.msra.mxu0 0.0
    %1037 = vmatprep.subr.mxu0 0.0
    %1038 = vmatpush1.msra.mxu0 0.0
    %1039 = vmatprep.subr.mxu0 0.0
    %1040 = vmatpush1.msra.mxu0 0.0
    %1041 = vmatprep.subr.mxu0 0.0
    %1042 = vmatpush1.msra.mxu0 0.0
    %1043 = vmatprep.mubr.f32.mxu0 0.0
    %1044 = vmatmul.mubr.f32.gmra.mrb[0].mxu0 %v975
    %v1045 = vpop.f32.mrb[0].mxu0
    %v1046 = vadd.f32 %v929, %v1045
    %v1047 = vpop.f32.mrb[0].mxu0
    %1048 = vmatprep.mubr.f32.mxu0 0.0
    %1049 = vmatmul.mubr.f32.gmra.mrb[0].mxu0 %v977
    %v1050 = vpop.f32.mrb[0].mxu0
    %v1051 = vadd.f32 %v929, %v1050
    %v1052 = vpop.f32.mrb[0].mxu0
    %1053 = vdwg.mxu0
    %v1056 = vcombine.high %v1046, %v1046
    %v1058 = vunpack.c.l.s4 1966171168
    %v1059 = vunpack.c.0.s8 %v1058
    %v1060 = vlaneseq
    %v1061 = vshrl.u32 %v1060, 7
    %v1062 = vsub.s32 %v1059, %v1061
    %v1063 = vrot.slane %v1046, %v1062
    %v1065 = vunpack.c.l.s4 1966171168
    %v1066 = vunpack.c.0.s8 %v1065
    %v1067 = vlaneseq
    %v1068 = vshrl.u32 %v1067, 7
    %v1069 = vsub.s32 %v1066, %v1068
    %v1070 = vrot.slane %v1056, %v1069
    %v1071 = vcombine.high %v1063, %v1063
    %v1072 = vcombine.high %v1070, %v1070
    %v1074 = vunpack.c.l.s4 1966171168
    %v1075 = vunpack.c.0.s8 %v1074
    %v1076 = vlaneseq
    %v1077 = vshrl.u32 %v1076, 7
    %v1078 = vsub.s32 %v1075, %v1077
    %v1079 = vrot.slane %v1063, %v1078
    %v1081 = vunpack.c.l.s4 1966171168
    %v1082 = vunpack.c.0.s8 %v1081
    %v1083 = vlaneseq
    %v1084 = vshrl.u32 %v1083, 7
    %v1085 = vsub.s32 %v1082, %v1084
    %v1086 = vrot.slane %v1070, %v1085
    %v1088 = vunpack.c.l.s4 1966171168
    %v1089 = vunpack.c.0.s8 %v1088
    %v1090 = vlaneseq
    %v1091 = vshrl.u32 %v1090, 7
    %v1092 = vsub.s32 %v1089, %v1091
    %v1093 = vrot.slane %v1071, %v1092
    %v1095 = vunpack.c.l.s4 1966171168
    %v1096 = vunpack.c.0.s8 %v1095
    %v1097 = vlaneseq
    %v1098 = vshrl.u32 %v1097, 7
    %v1099 = vsub.s32 %v1096, %v1098
    %v1100 = vrot.slane %v1072, %v1099
    %v1101 = vcombine.high %v1079, %v1079
    %v1102 = vcombine.high %v1086, %v1086
    %v1103 = vcombine.high %v1093, %v1093
    %v1104 = vcombine.high %v1100, %v1100
    %v1105 = vcombine.high %v1051, %v1051
    %v1107 = vunpack.c.l.s4 1966171168
    %v1108 = vunpack.c.0.s8 %v1107
    %v1109 = vlaneseq
    %v1110 = vshrl.u32 %v1109, 7
    %v1111 = vsub.s32 %v1108, %v1110
    %v1112 = vrot.slane %v1051, %v1111
    %v1114 = vunpack.c.l.s4 1966171168
    %v1115 = vunpack.c.0.s8 %v1114
    %v1116 = vlaneseq
    %v1117 = vshrl.u32 %v1116, 7
    %v1118 = vsub.s32 %v1115, %v1117
    %v1119 = vrot.slane %v1105, %v1118
    %v1120 = vcombine.high %v1112, %v1112
    %v1121 = vcombine.high %v1119, %v1119
    %v1123 = vunpack.c.l.s4 1966171168
    %v1124 = vunpack.c.0.s8 %v1123
    %v1125 = vlaneseq
    %v1126 = vshrl.u32 %v1125, 7
    %v1127 = vsub.s32 %v1124, %v1126
    %v1128 = vrot.slane %v1112, %v1127
    %v1130 = vunpack.c.l.s4 1966171168
    %v1131 = vunpack.c.0.s8 %v1130
    %v1132 = vlaneseq
    %v1133 = vshrl.u32 %v1132, 7
    %v1134 = vsub.s32 %v1131, %v1133
    %v1135 = vrot.slane %v1119, %v1134
    %v1137 = vunpack.c.l.s4 1966171168
    %v1138 = vunpack.c.0.s8 %v1137
    %v1139 = vlaneseq
    %v1140 = vshrl.u32 %v1139, 7
    %v1141 = vsub.s32 %v1138, %v1140
    %v1142 = vrot.slane %v1120, %v1141
    %v1144 = vunpack.c.l.s4 1966171168
    %v1145 = vunpack.c.0.s8 %v1144
    %v1146 = vlaneseq
    %v1147 = vshrl.u32 %v1146, 7
    %v1148 = vsub.s32 %v1145, %v1147
    %v1149 = vrot.slane %v1121, %v1148
    %v1150 = vcombine.high %v1128, %v1128
    %v1151 = vcombine.high %v1135, %v1135
    %v1152 = vcombine.high %v1142, %v1142
    %v1153 = vcombine.high %v1149, %v1149
    %1170 = vst.msk [vmem:[#allocation7 + $0x3] sm:$0x1] %vm317, %v1079
    %1171 = vst.msk [vmem:[#allocation7 + $0x7] sm:$0x1] %vm317, %v1093
    %1172 = vst.msk [vmem:[#allocation7 + $0xb] sm:$0x1] %vm317, %v1101
    %1173 = vst.msk [vmem:[#allocation7 + $0xf] sm:$0x1] %vm317, %v1103
    %1174 = vst.msk [vmem:[#allocation7 + $0x13] sm:$0x1] %vm317, %v1086
    %1175 = vst.msk [vmem:[#allocation7 + $0x17] sm:$0x1] %vm317, %v1100
    %1176 = vst.msk [vmem:[#allocation7 + $0x1b] sm:$0x1] %vm317, %v1102
    %1177 = vst.msk [vmem:[#allocation7 + $0x1f] sm:$0x1] %vm317, %v1104
    %1178 = vst.msk [vmem:[#allocation7 + $0x23] sm:$0x1] %vm317, %v1128
    %1179 = vst.msk [vmem:[#allocation7 + $0x27] sm:$0x1] %vm317, %v1142
    %1180 = vst.msk [vmem:[#allocation7 + $0x2b] sm:$0x1] %vm317, %v1150
    %1181 = vst.msk [vmem:[#allocation7 + $0x2f] sm:$0x1] %vm317, %v1152
    %1182 = vst.msk [vmem:[#allocation7 + $0x33] sm:$0x1] %vm317, %v1135
    %1183 = vst.msk [vmem:[#allocation7 + $0x37] sm:$0x1] %vm317, %v1149
    %1184 = vst.msk [vmem:[#allocation7 + $0x3b] sm:$0x1] %vm317, %v1151
    %1185 = vst.msk [vmem:[#allocation7 + $0x3f] sm:$0x1] %vm317, %v1153
    // Predicated region
    $region22: #{tpu_custom_call.1} parent=1 // pred_check
      _
    $region23: #{tpu_custom_call.1} parent=1 // pred_check_branch
      %1187 = sbr.rel (0) target = $region25
    $region24: #{tpu_custom_call.1} parent=1 // pred_region
      %s1189 = ssub.s32 1024, 1024
      %1190 = vsyncadd [#allocation4], %s1189
      %s1191 = sshll.u32 [#allocation7], 4
      %s1192 = int_to_ptr.vmem [resolvable:$true] %s1191
      %1197 = dma.vmem_to_hbm [thread:$0]  %s1192, 1024, %s3, [#allocation4], 64, 64, 4
    $region25: #{tpu_custom_call.1} parent=1 // pred_fallthru
      _
    // Predicated region
    $region26: #{tpu_custom_call.1} parent=1 // pred_check
      _
    $region27: #{tpu_custom_call.1} parent=1 // pred_check_branch
      %1199 = sbr.rel (0) target = $region29
    $region28: #{tpu_custom_call.1} parent=1 // pred_region
      %1200 = dma.done [#allocation4], 1024
    $region29: #{tpu_custom_call.1} parent=1 // pred_fallthru
      _
    %1201 = vsyncpa [#allocation3], 1
    %1202 = vsyncpa [#allocation6], 1
    %1203 = vsyncpa [#allocation4], 1

</llo_original>
